<compile_context>
chip_gen: v5e
topology: v5e:2x2
jax: 0.10.0
libtpu: 0.0.40
codegen_flags: <defaults>
</compile_context>

<pallas_src>
import jax
import jax.numpy as jnp
from jax.experimental import pallas as pl
from jax.experimental.pallas import tpu as pltpu

CIN = 110
COUT = 440


def relu_dense_sigmoid_kernel(x_ref, w_ref, b_ref, o_ref):
    # x_ref: (bn, CIN) f32 | w_ref: (CIN, COUT) bf16 | b_ref: (1, COUT) f32
    # o_ref: (bn, COUT) f32
    x = jnp.maximum(x_ref[...], 0.0).astype(jnp.bfloat16)            # ReLU (VPU) + cast for MXU
    y = jnp.dot(x, w_ref[...], preferred_element_type=jnp.float32)   # 1x1 conv == matmul (f32 acc)
    y = y + b_ref[...]                                                # bias broadcast over rows (f32)
    # Exact sigmoid epilogue in f32: exp on EUP + one divide.  The approx
    # reciprocal buys nothing here (epilogue is off the critical path).
    o_ref[...] = 1.0 / (1.0 + jnp.exp(-y))


def prepare_params(w_oihw, b):
    """One-time parameter prep (hoisted out of the per-call hot path):
    (Cout, Cin, 1, 1) f32 -> (Cin, Cout) bf16 weight, (1, Cout) f32 bias."""
    cout, cin = w_oihw.shape[0], w_oihw.shape[1]
    w2d = w_oihw.reshape(cout, cin).T.astype(jnp.bfloat16)   # (Cin, Cout)
    b2d = b.reshape(1, cout).astype(jnp.float32)
    return w2d, b2d


def _cost_estimate(n):
    return pl.CostEstimate(
        flops=2 * n * CIN * COUT,
        transcendentals=n * COUT,
        bytes_accessed=n * CIN * 4 + CIN * COUT * 2 + COUT * 4 + n * COUT * 4,
    )


@jax.jit
def relu_conv1x1_sigmoid(x_nchw, w_prep, b_prep):
    """x_nchw: (N, 110, 1, 1) f32; w_prep: (110, 440) bf16; b_prep: (1, 440) f32."""
    n, cin, h, w = x_nchw.shape
    assert (cin, h, w) == (CIN, 1, 1)
    x2d = x_nchw.reshape(n, cin)  # H = W = 1 -> metadata-only reshape

    if n <= 1024:
        # Small batch (the module's case, N=1): single whole-array invocation,
        # no grid / no pipeline machinery -- everything is one tiny VMEM tile.
        out = pl.pallas_call(
            relu_dense_sigmoid_kernel,
            out_shape=jax.ShapeDtypeStruct((n, COUT), jnp.float32),
            in_specs=[
                pl.BlockSpec(memory_space=pltpu.MemorySpace.VMEM),
                pl.BlockSpec(memory_space=pltpu.MemorySpace.VMEM),
                pl.BlockSpec(memory_space=pltpu.MemorySpace.VMEM),
            ],
            out_specs=pl.BlockSpec(memory_space=pltpu.MemorySpace.VMEM),
            cost_estimate=_cost_estimate(n),
        )(x2d, w_prep, b_prep)
    else:
        # Large batch: 1-D row grid with BlockSpec auto-pipelining; weight and
        # bias are revisited (stay VMEM-resident) across row blocks.  Row block
        # of 512 keeps (x + out) double-buffered blocks ~< 2 MiB -- safe on
        # v7x's 64 MiB VMEM -- and "parallel" lets the two v7x TCs split rows.
        bn = 512
        out = pl.pallas_call(
            relu_dense_sigmoid_kernel,
            out_shape=jax.ShapeDtypeStruct((n, COUT), jnp.float32),
            grid_spec=pltpu.PrefetchScalarGridSpec(
                num_scalar_prefetch=0,
                grid=(pl.cdiv(n, bn),),
                in_specs=[
                    pl.BlockSpec((bn, CIN), lambda i: (i, 0)),
                    pl.BlockSpec((CIN, COUT), lambda i: (0, 0)),
                    pl.BlockSpec((1, COUT), lambda i: (0, 0)),
                ],
                out_specs=pl.BlockSpec((bn, COUT), lambda i: (i, 0)),
            ),
            compiler_params=pltpu.CompilerParams(
                dimension_semantics=("parallel",)),
            cost_estimate=_cost_estimate(n),
        )(x2d, w_prep, b_prep)

    # (n, 440) -> (n, 440, 1, 1): metadata-only reshape (no sliced copy).
    return out.reshape(n, COUT, 1, 1)


def reference(x_nchw, w_oihw, b):
    # Full-f32 reference of the PyTorch module forward.
    x = jnp.maximum(x_nchw.reshape(x_nchw.shape[0], -1), 0.0)
    y = x @ w_oihw.reshape(w_oihw.shape[0], -1).T + b[None, :]
    return jax.nn.sigmoid(y).reshape(x_nchw.shape[0], -1, 1, 1)


if __name__ == "__main__":
    key = jax.random.PRNGKey(0)
    kx, kw, kb = jax.random.split(key, 3)

    # Shapes from Conv2d(110, 440, kernel_size=1) applied to (1, 110, 1, 1).
    x = jax.random.normal(kx, (1, CIN, 1, 1), dtype=jnp.float32)
    bound = 1.0 / (CIN ** 0.5)  # PyTorch-style uniform(-1/sqrt(fan_in), 1/sqrt(fan_in))
    w = jax.random.uniform(kw, (COUT, CIN, 1, 1), dtype=jnp.float32,
                           minval=-bound, maxval=bound)
    b = jax.random.uniform(kb, (COUT,), dtype=jnp.float32,
                           minval=-bound, maxval=bound)

    # One-time parameter prep (transpose / cast hoisted out of the hot path).
    w_prep, b_prep = prepare_params(w, b)

    out = jax.block_until_ready(relu_conv1x1_sigmoid(x, w_prep, b_prep))

    ref = reference(x, w, b)
    assert out.shape == (1, COUT, 1, 1)
    # bf16 weights + bf16-cast activations: error lands well under 2e-3 post-sigmoid.
    assert jnp.allclose(out, ref, atol=2e-3, rtol=2e-3), "mismatch vs reference"

    print("KERNEL_OK")
</pallas_src>

<mosaic_0001>
module attributes {stable_mosaic.version = 11 : i64} {
  func.func @relu_dense_sigmoid_kernel(%arg0: memref<1x110xf32, #tpu.memory_space<vmem>>, %arg1: memref<110x440xbf16, #tpu.memory_space<vmem>>, %arg2: memref<1x440xf32, #tpu.memory_space<vmem>>, %arg3: memref<1x440xf32, #tpu.memory_space<vmem>>) attributes {dimension_semantics = [], scalar_prefetch = 0 : i64, scratch_operands = 0 : i64, tpu.core_type = #tpu.core_type<tc>} {
    %c0 = arith.constant 0 : index
    %c0_0 = arith.constant 0 : index
    %0 = vector.load %arg0[%c0, %c0_0] : memref<1x110xf32, #tpu.memory_space<vmem>>, vector<1x110xf32>
    %cst = arith.constant 0.000000e+00 : f32
    %1 = vector.broadcast %cst : f32 to vector<1x110xf32>
    %2 = arith.maximumf %0, %1 : vector<1x110xf32>
    %3 = arith.truncf %2 : vector<1x110xf32> to vector<1x110xbf16>
    %c0_1 = arith.constant 0 : index
    %c0_2 = arith.constant 0 : index
    %4 = vector.load %arg1[%c0_1, %c0_2] : memref<110x440xbf16, #tpu.memory_space<vmem>>, vector<110x440xbf16>
    %cst_3 = arith.constant dense<0.000000e+00> : vector<1x440xf32>
    %5 = tpu.matmul %3, %4, %cst_3 {dimension_numbers = #tpu.dot_dimension_numbers<[1], [0], [0], [1], [0, 0, 1, 1], [], []>} : vector<1x110xbf16>, vector<110x440xbf16>, vector<1x440xf32> -> vector<1x440xf32>
    %c0_4 = arith.constant 0 : index
    %c0_5 = arith.constant 0 : index
    %6 = vector.load %arg2[%c0_4, %c0_5] : memref<1x440xf32, #tpu.memory_space<vmem>>, vector<1x440xf32>
    %7 = arith.addf %5, %6 : vector<1x440xf32>
    %cst_6 = arith.constant 0.000000e+00 : f32
    %8 = vector.broadcast %cst_6 : f32 to vector<1x440xf32>
    %9 = arith.subf %8, %7 : vector<1x440xf32>
    %10 = math.exp %9 : vector<1x440xf32>
    %cst_7 = arith.constant 1.000000e+00 : f32
    %11 = vector.broadcast %cst_7 : f32 to vector<1x440xf32>
    %12 = arith.addf %11, %10 : vector<1x440xf32>
    %cst_8 = arith.constant 1.000000e+00 : f32
    %13 = vector.broadcast %cst_8 : f32 to vector<1x440xf32>
    %14 = arith.divf %13, %12 : vector<1x440xf32>
    %c0_9 = arith.constant 0 : index
    %c0_10 = arith.constant 0 : index
    %15 = vector.load %arg3[%c0_9, %c0_10] : memref<1x440xf32, #tpu.memory_space<vmem>>, vector<1x440xf32>
    tpu.vector_store %arg3[%c0_9, %c0_10], %14 {strides = array<i32>} : memref<1x440xf32, #tpu.memory_space<vmem>>, vector<1x440xf32>,
    return
  }
}

</mosaic_0001>

<llo_original>
// kernel: relu_conv1x1_sigmoid.1
$region0: #{relu_conv1x1_sigmoid.1}
  #allocation0 [shape = 'u32[]', space=smem, size = 0x4, offset = 0x4, fixed_abs, tag = 'smem constant byte address 0x4 - core index']
  #allocation1 [shape = 'u32[72,128]{1,0:T(1,128)}', space=vmem, size = 0x9000, scoped, tag = 'internal scratch']
  %s0 = inlined_call_operand.vmem [shape: f32[1,110], index: 0, kind: input, shape index: {}]
  %s1 = inlined_call_operand.vmem [shape: bf16[110,440], index: 1, kind: input, shape index: {}]
  %s2 = inlined_call_operand.vmem [shape: f32[1,440], index: 2, kind: input, shape index: {}]
  %s3 = inlined_call_operand.hbm [shape: f32[1,440], index: 3, kind: output, shape index: {}]
  %s4 = sld [smem:[#allocation0]]
  $region22: #{relu_conv1x1_sigmoid.1} parent=0
    _
  %s6 = ssub.s32 1, %s4
  %s7 = scalar_select 0, %s6, %s4
  $region1: #{relu_conv1x1_sigmoid.1} parent=0
    #allocation2 [shape = 'u8[2048]{0}', space=vmem, size = 0x800, scoped, tag = 'output window, operand 0, single buffered']
    #allocation3 [shape = 's32[1]{0}', space=sflag, size = 0x4, scoped, tag = 'scoped memory for relu_conv1x1_sigmoid.1']
    %8 = vsyncpa [#allocation3], 0
    // Predicated region
    $region2: #{relu_conv1x1_sigmoid.1} parent=1 // pred_check
      _
    $region3: #{relu_conv1x1_sigmoid.1} parent=1 // pred_check_branch
      %10 = sbr.rel (0) target = $region5
    $region4: #{relu_conv1x1_sigmoid.1} parent=1 // pred_region
      _
    $region5: #{relu_conv1x1_sigmoid.1} parent=1 // pred_fallthru
      _
    // Predicated region
    $region6: #{relu_conv1x1_sigmoid.1} parent=1 // pred_check
      _
    $region7: #{relu_conv1x1_sigmoid.1} parent=1 // pred_check_branch
      %12 = sbr.rel (0) target = $region9
    $region8: #{relu_conv1x1_sigmoid.1} parent=1 // pred_region
      _
    $region9: #{relu_conv1x1_sigmoid.1} parent=1 // pred_fallthru
      _
    // Predicated region
    $region10: #{relu_conv1x1_sigmoid.1} parent=1 // pred_check
      _
    $region11: #{relu_conv1x1_sigmoid.1} parent=1 // pred_check_branch
      %14 = sbr.rel (0) target = $region13
    $region12: #{relu_conv1x1_sigmoid.1} parent=1 // pred_region
      _
    $region13: #{relu_conv1x1_sigmoid.1} parent=1 // pred_fallthru
      _
    %v16 = vld [vmem:[%s0] sm:$0x1]
    %v17 = vmax.f32 %v16, 0.0
    %v18 = vpack.c.bf16 %v17, %v17
    %v19 = vld [vmem:[%s1] sm:$0xff]
    %v20 = vld [vmem:[%s1 + $0x8] sm:$0xff]
    %v21 = vld [vmem:[%s1 + $0x10] sm:$0xff]
    %v22 = vld [vmem:[%s1 + $0x18] sm:$0xff]
    %v23 = vld [vmem:[%s1 + $0x20] sm:$0xff]
    %v24 = vld [vmem:[%s1 + $0x28] sm:$0xff]
    %v25 = vld [vmem:[%s1 + $0x30] sm:$0xff]
    %v26 = vld [vmem:[%s1 + $0x38] sm:$0xff]
    %v27 = vld [vmem:[%s1 + $0x40] sm:$0xff]
    %v28 = vld [vmem:[%s1 + $0x48] sm:$0xff]
    %v29 = vld [vmem:[%s1 + $0x50] sm:$0xff]
    %v30 = vld [vmem:[%s1 + $0x58] sm:$0xff]
    %v31 = vld [vmem:[%s1 + $0x60] sm:$0xff]
    %v32 = vld [vmem:[%s1 + $0x68] sm:$0xff]
    %v33 = vld [vmem:[%s1 + $0x70] sm:$0xff]
    %v34 = vld [vmem:[%s1 + $0x78] sm:$0xff]
    %v35 = vld [vmem:[%s1 + $0x80] sm:$0xff]
    %v36 = vld [vmem:[%s1 + $0x88] sm:$0xff]
    %v37 = vld [vmem:[%s1 + $0x90] sm:$0xff]
    %v38 = vld [vmem:[%s1 + $0x98] sm:$0xff]
    %v39 = vld [vmem:[%s1 + $0xa0] sm:$0xff]
    %v40 = vld [vmem:[%s1 + $0xa8] sm:$0xff]
    %v41 = vld [vmem:[%s1 + $0xb0] sm:$0xff]
    %v42 = vld [vmem:[%s1 + $0xb8] sm:$0xff]
    %v43 = vld [vmem:[%s1 + $0xc0] sm:$0xff]
    %v44 = vld [vmem:[%s1 + $0xc8] sm:$0xff]
    %v45 = vld [vmem:[%s1 + $0xd0] sm:$0x77]
    %v46 = vld [vmem:[%s1 + $0xd8] sm:$0x77]
    %v47 = vld [vmem:[%s2] sm:$0xf]
    %v76 = vunpack.c.l.b16 %v19
    %v77 = vunpack.c.h.b16 %v19
    %v78 = vunpack.c.l.b16 %v20
    %v79 = vunpack.c.h.b16 %v20
    %v80 = vunpack.c.l.b16 %v21
    %v81 = vunpack.c.h.b16 %v21
    %v82 = vunpack.c.l.b16 %v22
    %v83 = vunpack.c.h.b16 %v22
    %v84 = vunpack.c.l.b16 %v23
    %v85 = vunpack.c.h.b16 %v23
    %v86 = vunpack.c.l.b16 %v24
    %v87 = vunpack.c.h.b16 %v24
    %v88 = vunpack.c.l.b16 %v25
    %v89 = vunpack.c.h.b16 %v25
    %v90 = vunpack.c.l.b16 %v26
    %v91 = vunpack.c.h.b16 %v26
    %v92 = vunpack.c.l.b16 %v27
    %v93 = vunpack.c.h.b16 %v27
    %v94 = vunpack.c.l.b16 %v28
    %v95 = vunpack.c.h.b16 %v28
    %v96 = vunpack.c.l.b16 %v29
    %v97 = vunpack.c.h.b16 %v29
    %v98 = vunpack.c.l.b16 %v30
    %v99 = vunpack.c.h.b16 %v30
    %v100 = vunpack.c.l.b16 %v31
    %v101 = vunpack.c.h.b16 %v31
    %v102 = vunpack.c.l.b16 %v32
    %v103 = vunpack.c.h.b16 %v32
    %v104 = vunpack.c.l.b16 %v33
    %v105 = vunpack.c.h.b16 %v33
    %v106 = vunpack.c.l.b16 %v34
    %v107 = vunpack.c.h.b16 %v34
    %v108 = vunpack.c.l.b16 %v35
    %v109 = vunpack.c.h.b16 %v35
    %v110 = vunpack.c.l.b16 %v36
    %v111 = vunpack.c.h.b16 %v36
    %v112 = vunpack.c.l.b16 %v37
    %v113 = vunpack.c.h.b16 %v37
    %v114 = vunpack.c.l.b16 %v38
    %v115 = vunpack.c.h.b16 %v38
    %v116 = vunpack.c.l.b16 %v39
    %v117 = vunpack.c.h.b16 %v39
    %v118 = vunpack.c.l.b16 %v40
    %v119 = vunpack.c.h.b16 %v40
    %v120 = vunpack.c.l.b16 %v41
    %v121 = vunpack.c.h.b16 %v41
    %v122 = vunpack.c.l.b16 %v42
    %v123 = vunpack.c.h.b16 %v42
    %v124 = vunpack.c.l.b16 %v43
    %v125 = vunpack.c.h.b16 %v43
    %v126 = vunpack.c.l.b16 %v44
    %v127 = vunpack.c.h.b16 %v44
    %v128 = vunpack.c.l.b16 %v45
    %v129 = vunpack.c.h.b16 %v45
    %v130 = vunpack.c.l.b16 %v46
    %v131 = vunpack.c.h.b16 %v46
    %v132 = vpack.c.b16 %v80, %v76
    %v133 = vpack.c.b16 %v81, %v77
    %v134 = vpack.c.b16 %v82, %v78
    %v135 = vpack.c.b16 %v83, %v79
    %v136 = vpack.c.b16 %v88, %v84
    %v137 = vpack.c.b16 %v89, %v85
    %v138 = vpack.c.b16 %v90, %v86
    %v139 = vpack.c.b16 %v91, %v87
    %v140 = vpack.c.b16 %v96, %v92
    %v141 = vpack.c.b16 %v97, %v93
    %v142 = vpack.c.b16 %v98, %v94
    %v143 = vpack.c.b16 %v99, %v95
    %v144 = vpack.c.b16 %v104, %v100
    %v145 = vpack.c.b16 %v105, %v101
    %v146 = vpack.c.b16 %v106, %v102
    %v147 = vpack.c.b16 %v107, %v103
    %v148 = vpack.c.b16 %v112, %v108
    %v149 = vpack.c.b16 %v113, %v109
    %v150 = vpack.c.b16 %v114, %v110
    %v151 = vpack.c.b16 %v115, %v111
    %v152 = vpack.c.b16 %v120, %v116
    %v153 = vpack.c.b16 %v121, %v117
    %v154 = vpack.c.b16 %v122, %v118
    %v155 = vpack.c.b16 %v123, %v119
    %v156 = vpack.c.b16 %v128, %v124
    %v157 = vpack.c.b16 %v129, %v125
    %v158 = vpack.c.b16 %v130, %v126
    %v159 = vpack.c.b16 %v131, %v127
    %v185 = vperm.slane %v47, 0
    %v186 = vperm.slane %v47, 1
    %v187 = vperm.slane %v47, 2
    %v188 = vperm.slane %v47, 3
    %vm193 = vcmask 900096
    %v195 = vsel %vm193, %v18, 0
    %vm197 = vcmask 1046528
    %v199 = vsel %vm197, %v156, 0
    %v202 = vsel %vm197, %v157, 0
    %v205 = vsel %vm197, %v158, 0
    %v208 = vsel %vm197, %v159, 0
    %210 = vmatpush.bf16.msra.mxu0 0
    %211 = vmatpush.bf16.msra.mxu0 %v199
    %212 = vmatpush.bf16.msra.mxu0 %v152
    %213 = vmatpush.bf16.msra.mxu0 %v148
    %214 = vmatpush.bf16.msra.mxu0 %v144
    %215 = vmatpush.bf16.msra.mxu0 %v140
    %216 = vmatpush.bf16.msra.mxu0 %v136
    %217 = vmatpush.bf16.msra.mxu0 %v132
    %218 = vmatmul.bf16.gmra.mxu0 %v195
    %v219 = vpop.f32.mrf.mxu0
    %v220 = vadd.f32 %v185, %v219
    %v221 = vpop.f32.mrf.mxu0
    %222 = vdwg.mxu0
    %223 = vmatpush.bf16.msra.mxu0 0
    %224 = vmatpush.bf16.msra.mxu0 %v202
    %225 = vmatpush.bf16.msra.mxu0 %v153
    %226 = vmatpush.bf16.msra.mxu0 %v149
    %227 = vmatpush.bf16.msra.mxu0 %v145
    %228 = vmatpush.bf16.msra.mxu0 %v141
    %229 = vmatpush.bf16.msra.mxu0 %v137
    %230 = vmatpush.bf16.msra.mxu0 %v133
    %231 = vmatmul.bf16.gmra.mxu0 %v195
    %v232 = vpop.f32.mrf.mxu0
    %v233 = vadd.f32 %v186, %v232
    %v234 = vpop.f32.mrf.mxu0
    %235 = vdwg.mxu0
    %236 = vmatpush.bf16.msra.mxu0 0
    %237 = vmatpush.bf16.msra.mxu0 %v205
    %238 = vmatpush.bf16.msra.mxu0 %v154
    %239 = vmatpush.bf16.msra.mxu0 %v150
    %240 = vmatpush.bf16.msra.mxu0 %v146
    %241 = vmatpush.bf16.msra.mxu0 %v142
    %242 = vmatpush.bf16.msra.mxu0 %v138
    %243 = vmatpush.bf16.msra.mxu0 %v134
    %244 = vmatmul.bf16.gmra.mxu0 %v195
    %v245 = vpop.f32.mrf.mxu0
    %v246 = vadd.f32 %v187, %v245
    %v247 = vpop.f32.mrf.mxu0
    %248 = vdwg.mxu0
    %249 = vmatpush.bf16.msra.mxu0 0
    %250 = vmatpush.bf16.msra.mxu0 %v208
    %251 = vmatpush.bf16.msra.mxu0 %v155
    %252 = vmatpush.bf16.msra.mxu0 %v151
    %253 = vmatpush.bf16.msra.mxu0 %v147
    %254 = vmatpush.bf16.msra.mxu0 %v143
    %255 = vmatpush.bf16.msra.mxu0 %v139
    %256 = vmatpush.bf16.msra.mxu0 %v135
    %257 = vmatmul.bf16.gmra.mxu0 %v195
    %v258 = vpop.f32.mrf.mxu0
    %v259 = vadd.f32 %v188, %v258
    %v260 = vpop.f32.mrf.mxu0
    %261 = vdwg.mxu0
    %v262 = vsub.f32 0.0, %v220
    %v263 = vsub.f32 0.0, %v233
    %v264 = vsub.f32 0.0, %v246
    %v265 = vsub.f32 0.0, %v259
    %v266 = vmul.f32 %v262, 1.442695
    %v267 = vpow.pop %v266
    %v268 = vmul.f32 %v263, 1.442695
    %v269 = vpow.pop %v268
    %v270 = vmul.f32 %v264, 1.442695
    %v271 = vpow.pop %v270
    %v272 = vmul.f32 %v265, 1.442695
    %v273 = vpow.pop %v272
    %v274 = vadd.f32 %v267, 1.0
    %v275 = vadd.f32 %v269, 1.0
    %v276 = vadd.f32 %v271, 1.0
    %v277 = vadd.f32 %v273, 1.0
    %v278 = vrcp.pop %v274
    %v279 = vmul.f32 %v274, %v278
    %v280 = vsub.f32 1.0, %v279
    %v281 = vmul.f32 %v278, %v280
    %v282 = vadd.f32 %v278, %v281
    %vm283 = vweird.f32 %v274
    %vm284 = vweird.f32 %v278
    %vm285 = vmor %vm283, %vm284
    %v286 = vsel %vm285, %v278, %v282
    %v287 = vand.u32 2147483647, %v274
    %vm288 = vcmp.eq.f32.partialorder %v287, 8.507059e+37
    %v289 = vand.u32 %v274, 2147483648
    %v290 = vor.u32 1.1754944e-38, %v289
    %v291 = vsel %vm288, %v290, %v286
    %v292 = vmul.f32 1.0, %v291
    %v293 = vrcp.pop %v275
    %v294 = vmul.f32 %v275, %v293
    %v295 = vsub.f32 1.0, %v294
    %v296 = vmul.f32 %v293, %v295
    %v297 = vadd.f32 %v293, %v296
    %vm298 = vweird.f32 %v275
    %vm299 = vweird.f32 %v293
    %vm300 = vmor %vm298, %vm299
    %v301 = vsel %vm300, %v293, %v297
    %v302 = vand.u32 2147483647, %v275
    %vm303 = vcmp.eq.f32.partialorder %v302, 8.507059e+37
    %v304 = vand.u32 %v275, 2147483648
    %v305 = vor.u32 1.1754944e-38, %v304
    %v306 = vsel %vm303, %v305, %v301
    %v307 = vmul.f32 1.0, %v306
    %v308 = vrcp.pop %v276
    %v309 = vmul.f32 %v276, %v308
    %v310 = vsub.f32 1.0, %v309
    %v311 = vmul.f32 %v308, %v310
    %v312 = vadd.f32 %v308, %v311
    %vm313 = vweird.f32 %v276
    %vm314 = vweird.f32 %v308
    %vm315 = vmor %vm313, %vm314
    %v316 = vsel %vm315, %v308, %v312
    %v317 = vand.u32 2147483647, %v276
    %vm318 = vcmp.eq.f32.partialorder %v317, 8.507059e+37
    %v319 = vand.u32 %v276, 2147483648
    %v320 = vor.u32 1.1754944e-38, %v319
    %v321 = vsel %vm318, %v320, %v316
    %v322 = vmul.f32 1.0, %v321
    %v323 = vrcp.pop %v277
    %v324 = vmul.f32 %v277, %v323
    %v325 = vsub.f32 1.0, %v324
    %v326 = vmul.f32 %v323, %v325
    %v327 = vadd.f32 %v323, %v326
    %vm328 = vweird.f32 %v277
    %vm329 = vweird.f32 %v323
    %vm330 = vmor %vm328, %vm329
    %v331 = vsel %vm330, %v323, %v327
    %v332 = vand.u32 2147483647, %v277
    %vm333 = vcmp.eq.f32.partialorder %v332, 8.507059e+37
    %v334 = vand.u32 %v277, 2147483648
    %v335 = vor.u32 1.1754944e-38, %v334
    %v336 = vsel %vm333, %v335, %v331
    %v337 = vmul.f32 1.0, %v336
    %v342 = vrot.slane %v307, 7
    %v343 = vrot.slane %v322, 6
    %v344 = vrot.slane %v337, 5
    %vm345 = vcmask 1040384
    %v346 = vsel %vm345, %v292, %v342
    %vm347 = vcmask 1042434
    %v348 = vsel %vm347, %v343, %v344
    %vm349 = vcmask 1041408
    %v350 = vsel %vm349, %v346, %v348
    %v352 = vlaneseq
    %vm353 = vcmp.ge.s32.totalorder %v352, 0
    %vm354 = vcmp.lt.s32.totalorder %v352, 440
    %vm355 = vmand %vm353, %vm354
    %356 = vst.msk [vmem:[#allocation2] sm:$0xf] %vm355, %v350
    // Predicated region
    $region14: #{relu_conv1x1_sigmoid.1} parent=1 // pred_check
      _
    $region15: #{relu_conv1x1_sigmoid.1} parent=1 // pred_check_branch
      %358 = sbr.rel (0) target = $region17
    $region16: #{relu_conv1x1_sigmoid.1} parent=1 // pred_region
      %360 = vsyncadd [#allocation3], 0
      %s362 = sshll.u32 [#allocation2], 4
      %s363 = int_to_ptr.vmem [resolvable:$true] %s362
      %s364 = sshll.u32 %s3, 4
      %s365 = int_to_ptr.hbm [resolvable:$true] %s364
      %367 = dma.vmem_to_hbm [thread:$0]  %s363, 64, %s365, [#allocation3]
    $region17: #{relu_conv1x1_sigmoid.1} parent=1 // pred_fallthru
      _
    // Predicated region
    $region18: #{relu_conv1x1_sigmoid.1} parent=1 // pred_check
      _
    $region19: #{relu_conv1x1_sigmoid.1} parent=1 // pred_check_branch
      %369 = sbr.rel (0) target = $region21
    $region20: #{relu_conv1x1_sigmoid.1} parent=1 // pred_region
      %371 = dma.done [#allocation3], 64
    $region21: #{relu_conv1x1_sigmoid.1} parent=1 // pred_fallthru
      _
    %372 = vsyncpa [#allocation3], 1

</llo_original>
